<compile_context>
chip_gen: v6e
topology: v6e:2x2x1
jax: 0.10.0
libtpu: 0.0.40
codegen_flags: <defaults>
</compile_context>

<pallas_src>
import functools
import math

import jax
import jax.numpy as jnp
from jax import lax
from jax.experimental import pallas as pl
from jax.experimental.pallas import tpu as pltpu


_VMEM_LIMIT = 48 * 1024 * 1024   # <= v7x's 64 MiB/TC; well under v5e/v6e 128 MiB


def _pick_tile(n, candidates):
    for c in candidates:
        if c <= n and n % c == 0:
            return c
    return n


def _rowcol_from_linear(idx_f32, w):
    """(row, col) of a flattened row-major index, in float (safe floor trick)."""
    row = jnp.floor((idx_f32 + 0.5) * (1.0 / w))
    col = idx_f32 - row * w
    return row, col


# --------------------------------------------------------------------------
# Kernel 1: fused feature encoder.  Per batch image (grid=(B,)):
#   conv1(3x3, C->hid) + ReLU  ->  hidden kept in a VMEM scratch (with halo)
#   conv2(3x3, hid->D)         ->  features written once to HBM.
# Row loops keep every matmul 2-D: (W, 9*Cin) @ (9*Cin, Cout) on the MXU.
# --------------------------------------------------------------------------
def _encoder_kernel(x_ref, w1_ref, b1_ref, w2_ref, b2_ref, out_ref, hbuf,
                    *, H, W, hid):
    w1 = w1_ref[...]                                  # (9*C, hid)   bf16
    b1 = b1_ref[...]                                  # (1, hid)     f32
    w2 = w2_ref[...]                                  # (9*hid, D)   bf16
    b2 = b2_ref[...]                                  # (1, D)       f32

    zrow = jnp.zeros((W + 2, hid), jnp.bfloat16)
    zcol = jnp.zeros((1, hid), jnp.bfloat16)
    hbuf[0] = zrow                                    # zero halo rows
    hbuf[H + 1] = zrow

    # ---- pass 1: conv1 + ReLU, hidden rows stored (with column halo) -------
    @pl.loop(0, H)
    def _(h):
        rows = [x_ref[h + dy] for dy in range(3)]     # each (W+2, C)
        patches = jnp.concatenate(
            [rows[dy][dx:dx + W, :] for dy in range(3) for dx in range(3)],
            axis=-1)                                  # (W, 9*C)
        acc = jnp.dot(patches, w1, preferred_element_type=jnp.float32) + b1
        hrow = jnp.maximum(acc, 0.0).astype(jnp.bfloat16)        # (W, hid)
        hbuf[h + 1] = jnp.concatenate([zcol, hrow, zcol], axis=0)  # (W+2, hid)

    # ---- pass 2: conv2 over the VMEM-resident hidden activation ------------
    @pl.loop(0, H)
    def _(h):
        rows = [hbuf[h + dy] for dy in range(3)]      # each (W+2, hid)
        patches = jnp.concatenate(
            [rows[dy][dx:dx + W, :] for dy in range(3) for dx in range(3)],
            axis=-1)                                  # (W, 9*hid)
        acc = jnp.dot(patches, w2, preferred_element_type=jnp.float32) + b2
        out_ref[h] = acc.astype(jnp.bfloat16)         # (W, D)


# --------------------------------------------------------------------------
# Kernel 2: correlation + iterative soft-argmax flow ("RAFT-lite").
# Keys on sublanes / queries on lanes; coords generated in-kernel via iota.
#   corr[k, q] = <f2[k], f1[q]> / sqrt(D)             (MXU, bf16 in / f32 acc)
# Loop-invariant prior algebra hoisted:
#   logits = base + kxs*(qx+fx) + kys*(qy+fy)   (per-query constant dropped —
#   it cancels in the softmax over keys).
# Output is lane-dense (2, TQ).
# --------------------------------------------------------------------------
def _flow_kernel(f1_ref, f2_ref, flow_ref, *, raft_iter, W, tq,
                 inv_sqrt_d, inv_temp, inv_2sig2):
    f1 = f1_ref[...]                                  # (TQ, D) bf16  queries
    f2 = f2_ref[...]                                  # (HW, D) bf16  keys
    HW = f2.shape[0]
    corr = lax.dot_general(f2, f1, (((1,), (1,)), ((), ())),
                           preferred_element_type=jnp.float32)      # (HW, TQ)

    kf = lax.broadcasted_iota(jnp.int32, (HW, 1), 0).astype(jnp.float32)
    ky, kx = _rowcol_from_linear(kf, W)               # (HW, 1)
    q0 = pl.program_id(1) * tq
    qf = (q0 + lax.broadcasted_iota(jnp.int32, (1, tq), 1)).astype(jnp.float32)
    qy, qx = _rowcol_from_linear(qf, W)               # (1, TQ)

    base = corr * (inv_sqrt_d * inv_temp) - (kx * kx + ky * ky) * inv_2sig2
    kxs = kx * (2.0 * inv_2sig2)                      # (HW, 1)
    kys = ky * (2.0 * inv_2sig2)

    def body(_, carry):
        fx, fy = carry                                # (1, TQ)
        logits = base + kxs * (qx + fx) + kys * (qy + fy)          # (HW, TQ)
        m = jnp.max(logits, axis=0, keepdims=True)
        p = jnp.exp(logits - m)                       # EUP
        # TODO(synk): on v6e/v7x a bf16 exp would double EUP throughput.
        inv_den = pl.reciprocal(jnp.sum(p, axis=0, keepdims=True), approx=False)
        ex = jnp.sum(p * kx, axis=0, keepdims=True) * inv_den
        ey = jnp.sum(p * ky, axis=0, keepdims=True) * inv_den
        return ex - qx, ey - qy

    zero = jnp.zeros((1, tq), jnp.float32)
    fx, fy = lax.fori_loop(0, raft_iter, body, (zero, zero))
    flow_ref[...] = jnp.concatenate([fx, fy], axis=0)  # (2, TQ) lane-dense


# --------------------------------------------------------------------------
# Kernel 3: separable bilinear backward warp (warp_image).
#   selx (W, TQ) / sely (H, TQ): 1-D bilinear selections, OOB zero-weighted
#   tmp = img(C*H, W) @ selx   -> MXU pass (M = C*H, not 3)
#   out[c, q] = sum_h tmp[c*H+h, q] * sely[h, q]   -> VPU/XLU reduce.
# Equivalent to grid_sample with zeros padding in raw-pixel coordinates.
# --------------------------------------------------------------------------
def _warp_kernel(img_ref, flow_ref, out_ref, *, C, H, W, tq):
    img = img_ref[...]                                # (C*H, W) bf16
    fl = flow_ref[...]                                # (2, TQ)  f32

    q0 = pl.program_id(1) * tq
    qf = (q0 + lax.broadcasted_iota(jnp.int32, (1, tq), 1)).astype(jnp.float32)
    qy, qx = _rowcol_from_linear(qf, W)
    px = qx + fl[0:1, :]
    py = qy + fl[1:2, :]

    x0 = jnp.floor(px); x1 = x0 + 1.0
    y0 = jnp.floor(py); y1 = y0 + 1.0
    wx1 = px - x0; wx0 = 1.0 - wx1
    wy1 = py - y0; wy0 = 1.0 - wy1

    def sel1d(idx, n, p0, p1, w0, w1):
        v0 = jnp.where((p0 >= 0.0) & (p0 <= n - 1.0), w0, 0.0)
        v1 = jnp.where((p1 >= 0.0) & (p1 <= n - 1.0), w1, 0.0)
        return jnp.where(idx == p0, v0, 0.0) + jnp.where(idx == p1, v1, 0.0)

    colf = lax.broadcasted_iota(jnp.int32, (W, 1), 0).astype(jnp.float32)
    rowf = lax.broadcasted_iota(jnp.int32, (H, 1), 0).astype(jnp.float32)
    selx = sel1d(colf, float(W), x0, x1, wx0, wx1).astype(jnp.bfloat16)  # (W, TQ)
    sely = sel1d(rowf, float(H), y0, y1, wy0, wy1)                       # (H, TQ)

    tmp = lax.dot_general(img, selx, (((1,), (0,)), ((), ())),
                          preferred_element_type=jnp.float32)            # (C*H, TQ)
    rows = [jnp.sum(tmp[c * H:(c + 1) * H, :] * sely, axis=0, keepdims=True)
            for c in range(C)]                        # C is small & static
    out_ref[...] = jnp.concatenate(rows, axis=0)      # (C, TQ) lane-dense


# --------------------------------------------------------------------------
# Wrapper module.
# --------------------------------------------------------------------------
class OpticalFlowEstimatorPallas:
    def __init__(self, raft_iter=20, cycle_th=3.0, use_observed_mask=False,
                 hidden_dim=16, feat_dim=32, seed=123):
        # TODO(synk): pretrained RAFT-Large weights cannot be loaded; the
        # feature-encoder weights below are synthetic deterministic params.
        self.raft_iter = raft_iter
        self.cycle_th = cycle_th
        self.use_observed_mask = use_observed_mask
        self.hidden_dim = hidden_dim
        self.feat_dim = feat_dim
        key = jax.random.PRNGKey(seed)
        k1, k2, k3, k4 = jax.random.split(key, 4)
        cin = 3
        self.w1 = (jax.random.normal(k1, (9 * cin, hidden_dim), jnp.float32)
                   / math.sqrt(9 * cin)).astype(jnp.bfloat16)
        self.b1 = (jax.random.normal(k2, (1, hidden_dim), jnp.float32) * 0.01)
        self.w2 = (jax.random.normal(k3, (9 * hidden_dim, feat_dim), jnp.float32)
                   / math.sqrt(9 * hidden_dim)).astype(jnp.bfloat16)
        self.b2 = (jax.random.normal(k4, (1, feat_dim), jnp.float32) * 0.01)

    # -------- fused feature encoder -----------------------------------------
    def _encode(self, x_nchw):
        B, C, H, W = x_nchw.shape
        hid, D = self.hidden_dim, self.feat_dim
        x = jnp.transpose(x_nchw, (0, 2, 3, 1)).astype(jnp.bfloat16)   # NHWC
        xpad = jnp.pad(x, ((0, 0), (1, 1), (1, 1), (0, 0)))            # halo pad

        feats = pl.pallas_call(
            functools.partial(_encoder_kernel, H=H, W=W, hid=hid),
            out_shape=jax.ShapeDtypeStruct((B, H, W, D), jnp.bfloat16),
            grid=(B,),
            in_specs=[
                pl.BlockSpec((None, H + 2, W + 2, C), lambda b: (b, 0, 0, 0)),
                pl.BlockSpec((9 * C, hid), lambda b: (0, 0)),
                pl.BlockSpec((1, hid), lambda b: (0, 0)),
                pl.BlockSpec((9 * hid, D), lambda b: (0, 0)),
                pl.BlockSpec((1, D), lambda b: (0, 0)),
            ],
            out_specs=pl.BlockSpec((None, H, W, D), lambda b: (b, 0, 0, 0)),
            scratch_shapes=[pltpu.VMEM((H + 2, W + 2, hid), jnp.bfloat16)],
            compiler_params=pltpu.CompilerParams(
                dimension_semantics=("parallel",),
                vmem_limit_bytes=_VMEM_LIMIT),
        )(xpad, self.w1, self.b1, self.w2, self.b2)
        return feats.reshape(B, H * W, D)                       # bf16 (B, HW, D)

    # -------- flow network ("RAFT-lite") ------------------------------------
    def compute_optical_flow(self, ctxt_nchw, trgt_nchw):
        B, C, H, W = ctxt_nchw.shape
        HW = H * W
        D = self.feat_dim
        f1 = self._encode(ctxt_nchw)                  # (B, HW, D) queries
        f2 = self._encode(trgt_nchw)                  # (B, HW, D) keys

        sigma = max(H, W) / 4.0
        # TQ=256: safe on v7x (64 MiB VMEM) and v5e (spill budget); v6e could
        # go larger but is kept chip-agnostic here.
        tq = _pick_tile(HW, (256, 128))
        kernel = functools.partial(
            _flow_kernel, raft_iter=self.raft_iter, W=W, tq=tq,
            inv_sqrt_d=1.0 / math.sqrt(D), inv_temp=1.0,
            inv_2sig2=1.0 / (2.0 * sigma * sigma))

        flow = pl.pallas_call(
            kernel,
            out_shape=jax.ShapeDtypeStruct((B, 2, HW), jnp.float32),
            grid=(B, HW // tq),
            in_specs=[
                pl.BlockSpec((None, tq, D), lambda b, q: (b, q, 0)),
                pl.BlockSpec((None, HW, D), lambda b, q: (b, 0, 0)),
            ],
            out_specs=pl.BlockSpec((None, 2, tq), lambda b, q: (b, 0, q)),
            compiler_params=pltpu.CompilerParams(
                dimension_semantics=("parallel", "parallel"),
                vmem_limit_bytes=_VMEM_LIMIT),
        )(f1, f2)

        # (B, 2, HW) -> (B, 2, H, W): channel 0 = dx, channel 1 = dy (RAFT order)
        return flow.reshape(B, 2, H, W)

    # -------- separable bilinear backward warp (warp_image) -----------------
    def warp_image(self, image_nchw, flow_nchw):
        B, C, H, W = image_nchw.shape
        HW = H * W
        img = image_nchw.reshape(B, C * H, W).astype(jnp.bfloat16)  # cast once
        flw = flow_nchw.reshape(B, 2, HW)
        tq = _pick_tile(HW, (256, 128))

        warped = pl.pallas_call(
            functools.partial(_warp_kernel, C=C, H=H, W=W, tq=tq),
            out_shape=jax.ShapeDtypeStruct((B, C, HW), jnp.float32),
            grid=(B, HW // tq),
            in_specs=[
                pl.BlockSpec((None, C * H, W), lambda b, q: (b, 0, 0)),
                pl.BlockSpec((None, 2, tq), lambda b, q: (b, 0, q)),
            ],
            out_specs=pl.BlockSpec((None, C, tq), lambda b, q: (b, 0, q)),
            compiler_params=pltpu.CompilerParams(
                dimension_semantics=("parallel", "parallel"),
                vmem_limit_bytes=_VMEM_LIMIT),
        )(img, flw)
        return warped.reshape(B, C, H, W)

    # -------- forward --------------------------------------------------------
    def __call__(self, condition_image, pixel_values):
        v = pixel_values.shape[0] // condition_image.shape[0]
        # einops repeat 'b c h w -> (b v) c h w'
        image_ctxt_raft = jnp.repeat(condition_image, v, axis=0)
        flow_f = self.compute_optical_flow(image_ctxt_raft, pixel_values)
        flow_warped_frames = self.warp_image(image_ctxt_raft, flow_f)
        log_dict = {'flow_warped_frames': flow_warped_frames}
        if self.use_observed_mask:
            # TODO(synk): run_filtering (fwd/bwd cycle-consistency mask) not ported.
            pass
        return flow_f, log_dict


if __name__ == "__main__":
    key = jax.random.PRNGKey(0)
    k_cond, k_pix = jax.random.split(key)
    b, v, C, H, W = 2, 2, 3, 16, 16
    condition_image = jax.random.uniform(k_cond, (b, C, H, W), jnp.float32)
    pixel_values = jax.random.uniform(k_pix, (b * v, C, H, W), jnp.float32)

    est = OpticalFlowEstimatorPallas(raft_iter=20)
    flow_f, log_dict = est(condition_image, pixel_values)
    flow_f = jax.block_until_ready(flow_f)
    warped = jax.block_until_ready(log_dict['flow_warped_frames'])

    assert flow_f.shape == (b * v, 2, H, W), flow_f.shape
    assert warped.shape == (b * v, C, H, W), warped.shape
    assert bool(jnp.all(jnp.isfinite(flow_f))) and bool(jnp.all(jnp.isfinite(warped)))
    print("KERNEL_OK")
</pallas_src>

<mosaic_0001>
module attributes {stable_mosaic.version = 11 : i64} {
  func.func @_encoder_kernel(%arg0: i32, %arg1: memref<1x18x18x3xbf16, #tpu.memory_space<vmem>>, %arg2: memref<27x16xbf16, #tpu.memory_space<vmem>>, %arg3: memref<1x16xf32, #tpu.memory_space<vmem>>, %arg4: memref<144x32xbf16, #tpu.memory_space<vmem>>, %arg5: memref<1x32xf32, #tpu.memory_space<vmem>>, %arg6: memref<1x16x16x32xbf16, #tpu.memory_space<vmem>>, %arg7: memref<18x18x16xbf16, #tpu.memory_space<vmem>>) attributes {dimension_semantics = [#tpu.dimension_semantics<parallel>], iteration_bounds = array<i64: 4>, scalar_prefetch = 0 : i64, scratch_operands = 1 : i64, tpu.core_type = #tpu.core_type<tc>, window_params = [{transform_indices = @transform_0, window_bounds = array<i64: 1, 18, 18, 3>}, {pipeline_mode = #tpu.pipeline_mode<synchronous>, transform_indices = @transform_1, window_bounds = array<i64: 27, 16>}, {pipeline_mode = #tpu.pipeline_mode<synchronous>, transform_indices = @transform_2, window_bounds = array<i64: 1, 16>}, {pipeline_mode = #tpu.pipeline_mode<synchronous>, transform_indices = @transform_3, window_bounds = array<i64: 144, 32>}, {pipeline_mode = #tpu.pipeline_mode<synchronous>, transform_indices = @transform_4, window_bounds = array<i64: 1, 32>}, {transform_indices = @transform_5, window_bounds = array<i64: 1, 16, 16, 32>}]} {
    %c0 = arith.constant 0 : index
    %c0_0 = arith.constant 0 : index
    %0 = vector.load %arg2[%c0, %c0_0] : memref<27x16xbf16, #tpu.memory_space<vmem>>, vector<27x16xbf16>
    %c0_1 = arith.constant 0 : index
    %c0_2 = arith.constant 0 : index
    %1 = vector.load %arg3[%c0_1, %c0_2] : memref<1x16xf32, #tpu.memory_space<vmem>>, vector<1x16xf32>
    %c0_3 = arith.constant 0 : index
    %c0_4 = arith.constant 0 : index
    %2 = vector.load %arg4[%c0_3, %c0_4] : memref<144x32xbf16, #tpu.memory_space<vmem>>, vector<144x32xbf16>
    %c0_5 = arith.constant 0 : index
    %c0_6 = arith.constant 0 : index
    %3 = vector.load %arg5[%c0_5, %c0_6] : memref<1x32xf32, #tpu.memory_space<vmem>>, vector<1x32xf32>
    %cst = arith.constant 0.000000e+00 : bf16
    %4 = vector.broadcast %cst : bf16 to vector<18x16xbf16>
    %cst_7 = arith.constant 0.000000e+00 : bf16
    %5 = vector.broadcast %cst_7 : bf16 to vector<1x16xbf16>
    %c0_8 = arith.constant 0 : index
    %c0_9 = arith.constant 0 : index
    %c0_10 = arith.constant 0 : index
    %6 = vector.load %arg7[%c0_8, %c0_9, %c0_10] : memref<18x18x16xbf16, #tpu.memory_space<vmem>>, vector<1x18x16xbf16>
    %7 = vector.shape_cast %6 : vector<1x18x16xbf16> to vector<18x16xbf16>
    %8 = vector.shape_cast %4 : vector<18x16xbf16> to vector<1x18x16xbf16>
    tpu.vector_store %arg7[%c0_8, %c0_9, %c0_10], %8 {strides = array<i32>} : memref<18x18x16xbf16, #tpu.memory_space<vmem>>, vector<1x18x16xbf16>,
    %c17 = arith.constant 17 : index
    %c0_11 = arith.constant 0 : index
    %c0_12 = arith.constant 0 : index
    %9 = vector.load %arg7[%c17, %c0_11, %c0_12] : memref<18x18x16xbf16, #tpu.memory_space<vmem>>, vector<1x18x16xbf16>
    %10 = vector.shape_cast %9 : vector<1x18x16xbf16> to vector<18x16xbf16>
    %11 = vector.shape_cast %4 : vector<18x16xbf16> to vector<1x18x16xbf16>
    tpu.vector_store %arg7[%c17, %c0_11, %c0_12], %11 {strides = array<i32>} : memref<18x18x16xbf16, #tpu.memory_space<vmem>>, vector<1x18x16xbf16>,
    %c0_i32 = arith.constant 0 : i32
    %c16_i32 = arith.constant 16 : i32
    %12 = arith.addi %c0_i32, %c16_i32 : i32
    %c1_i32 = arith.constant 1 : i32
    scf.for %arg8 = %c0_i32 to %12 step %c1_i32  : i32 {
      %c1_i32_18 = arith.constant 1 : i32
      %14 = arith.muli %arg8, %c1_i32_18 : i32
      %c0_i32_19 = arith.constant 0 : i32
      %15 = arith.addi %c0_i32_19, %14 : i32
      %c0_i32_20 = arith.constant 0 : i32
      %16 = arith.addi %15, %c0_i32_20 : i32
      %c0_21 = arith.constant 0 : index
      %17 = arith.index_cast %16 : i32 to index
      %c0_22 = arith.constant 0 : index
      %c0_23 = arith.constant 0 : index
      %18 = vector.load %arg1[%c0_21, %17, %c0_22, %c0_23] : memref<1x18x18x3xbf16, #tpu.memory_space<vmem>>, vector<1x1x18x3xbf16>
      %19 = vector.shape_cast %18 : vector<1x1x18x3xbf16> to vector<18x3xbf16>
      %c1_i32_24 = arith.constant 1 : i32
      %20 = arith.addi %15, %c1_i32_24 : i32
      %c0_25 = arith.constant 0 : index
      %21 = arith.index_cast %20 : i32 to index
      %c0_26 = arith.constant 0 : index
      %c0_27 = arith.constant 0 : index
      %22 = vector.load %arg1[%c0_25, %21, %c0_26, %c0_27] : memref<1x18x18x3xbf16, #tpu.memory_space<vmem>>, vector<1x1x18x3xbf16>
      %23 = vector.shape_cast %22 : vector<1x1x18x3xbf16> to vector<18x3xbf16>
      %c2_i32 = arith.constant 2 : i32
      %24 = arith.addi %15, %c2_i32 : i32
      %c0_28 = arith.constant 0 : index
      %25 = arith.index_cast %24 : i32 to index
      %c0_29 = arith.constant 0 : index
      %c0_30 = arith.constant 0 : index
      %26 = vector.load %arg1[%c0_28, %25, %c0_29, %c0_30] : memref<1x18x18x3xbf16, #tpu.memory_space<vmem>>, vector<1x1x18x3xbf16>
      %27 = vector.shape_cast %26 : vector<1x1x18x3xbf16> to vector<18x3xbf16>
      %28 = vector.extract_strided_slice %19 {offsets = [0, 0], sizes = [16, 3], strides = [1, 1]} : vector<18x3xbf16> to vector<16x3xbf16>
      %29 = vector.extract_strided_slice %19 {offsets = [1, 0], sizes = [16, 3], strides = [1, 1]} : vector<18x3xbf16> to vector<16x3xbf16>
      %30 = vector.extract_strided_slice %19 {offsets = [2, 0], sizes = [16, 3], strides = [1, 1]} : vector<18x3xbf16> to vector<16x3xbf16>
      %31 = vector.extract_strided_slice %23 {offsets = [0, 0], sizes = [16, 3], strides = [1, 1]} : vector<18x3xbf16> to vector<16x3xbf16>
      %32 = vector.extract_strided_slice %23 {offsets = [1, 0], sizes = [16, 3], strides = [1, 1]} : vector<18x3xbf16> to vector<16x3xbf16>
      %33 = vector.extract_strided_slice %23 {offsets = [2, 0], sizes = [16, 3], strides = [1, 1]} : vector<18x3xbf16> to vector<16x3xbf16>
      %34 = vector.extract_strided_slice %27 {offsets = [0, 0], sizes = [16, 3], strides = [1, 1]} : vector<18x3xbf16> to vector<16x3xbf16>
      %35 = vector.extract_strided_slice %27 {offsets = [1, 0], sizes = [16, 3], strides = [1, 1]} : vector<18x3xbf16> to vector<16x3xbf16>
      %36 = vector.extract_strided_slice %27 {offsets = [2, 0], sizes = [16, 3], strides = [1, 1]} : vector<18x3xbf16> to vector<16x3xbf16>
      %37 = tpu.concatenate %28, %29, %30, %31, %32, %33, %34, %35, %36 in 1 : vector<16x3xbf16>, vector<16x3xbf16>, vector<16x3xbf16>, vector<16x3xbf16>, vector<16x3xbf16>, vector<16x3xbf16>, vector<16x3xbf16>, vector<16x3xbf16>, vector<16x3xbf16> -> vector<16x27xbf16>
      %cst_31 = arith.constant dense<0.000000e+00> : vector<16x16xf32>
      %38 = tpu.matmul %37, %0, %cst_31 {dimension_numbers = #tpu.dot_dimension_numbers<[1], [0], [0], [1], [0, 0, 1, 1], [], []>} : vector<16x27xbf16>, vector<27x16xbf16>, vector<16x16xf32> -> vector<16x16xf32>
      %39 = vector.broadcast %1 : vector<1x16xf32> to vector<16x16xf32>
      %40 = arith.addf %38, %39 : vector<16x16xf32>
      %cst_32 = arith.constant 0.000000e+00 : f32
      %41 = vector.broadcast %cst_32 : f32 to vector<16x16xf32>
      %42 = arith.maximumf %40, %41 : vector<16x16xf32>
      %43 = arith.truncf %42 : vector<16x16xf32> to vector<16x16xbf16>
      %44 = tpu.concatenate %5, %43, %5 in 0 : vector<1x16xbf16>, vector<16x16xbf16>, vector<1x16xbf16> -> vector<18x16xbf16>
      %c1_i32_33 = arith.constant 1 : i32
      %45 = arith.addi %15, %c1_i32_33 : i32
      %46 = arith.index_cast %45 : i32 to index
      %c0_34 = arith.constant 0 : index
      %c0_35 = arith.constant 0 : index
      %47 = vector.load %arg7[%46, %c0_34, %c0_35] : memref<18x18x16xbf16, #tpu.memory_space<vmem>>, vector<1x18x16xbf16>
      %48 = vector.shape_cast %47 : vector<1x18x16xbf16> to vector<18x16xbf16>
      %49 = vector.shape_cast %44 : vector<18x16xbf16> to vector<1x18x16xbf16>
      tpu.vector_store %arg7[%46, %c0_34, %c0_35], %49 {strides = array<i32>} : memref<18x18x16xbf16, #tpu.memory_space<vmem>>, vector<1x18x16xbf16>,
    }
    %c16_i32_13 = arith.constant 16 : i32
    %c0_i32_14 = arith.constant 0 : i32
    %c16_i32_15 = arith.constant 16 : i32
    %13 = arith.addi %c0_i32_14, %c16_i32_15 : i32
    %c1_i32_16 = arith.constant 1 : i32
    scf.for %arg8 = %c0_i32_14 to %13 step %c1_i32_16  : i32 {
      %c1_i32_18 = arith.constant 1 : i32
      %14 = arith.muli %arg8, %c1_i32_18 : i32
      %c0_i32_19 = arith.constant 0 : i32
      %15 = arith.addi %c0_i32_19, %14 : i32
      %c0_i32_20 = arith.constant 0 : i32
      %16 = arith.addi %15, %c0_i32_20 : i32
      %17 = arith.index_cast %16 : i32 to index
      %c0_21 = arith.constant 0 : index
      %c0_22 = arith.constant 0 : index
      %18 = vector.load %arg7[%17, %c0_21, %c0_22] : memref<18x18x16xbf16, #tpu.memory_space<vmem>>, vector<1x18x16xbf16>
      %19 = vector.shape_cast %18 : vector<1x18x16xbf16> to vector<18x16xbf16>
      %c1_i32_23 = arith.constant 1 : i32
      %20 = arith.addi %15, %c1_i32_23 : i32
      %21 = arith.index_cast %20 : i32 to index
      %c0_24 = arith.constant 0 : index
      %c0_25 = arith.constant 0 : index
      %22 = vector.load %arg7[%21, %c0_24, %c0_25] : memref<18x18x16xbf16, #tpu.memory_space<vmem>>, vector<1x18x16xbf16>
      %23 = vector.shape_cast %22 : vector<1x18x16xbf16> to vector<18x16xbf16>
      %c2_i32 = arith.constant 2 : i32
      %24 = arith.addi %15, %c2_i32 : i32
      %25 = arith.index_cast %24 : i32 to index
      %c0_26 = arith.constant 0 : index
      %c0_27 = arith.constant 0 : index
      %26 = vector.load %arg7[%25, %c0_26, %c0_27] : memref<18x18x16xbf16, #tpu.memory_space<vmem>>, vector<1x18x16xbf16>
      %27 = vector.shape_cast %26 : vector<1x18x16xbf16> to vector<18x16xbf16>
      %28 = vector.extract_strided_slice %19 {offsets = [0, 0], sizes = [16, 16], strides = [1, 1]} : vector<18x16xbf16> to vector<16x16xbf16>
      %29 = vector.extract_strided_slice %19 {offsets = [1, 0], sizes = [16, 16], strides = [1, 1]} : vector<18x16xbf16> to vector<16x16xbf16>
      %30 = vector.extract_strided_slice %19 {offsets = [2, 0], sizes = [16, 16], strides = [1, 1]} : vector<18x16xbf16> to vector<16x16xbf16>
      %31 = vector.extract_strided_slice %23 {offsets = [0, 0], sizes = [16, 16], strides = [1, 1]} : vector<18x16xbf16> to vector<16x16xbf16>
      %32 = vector.extract_strided_slice %23 {offsets = [1, 0], sizes = [16, 16], strides = [1, 1]} : vector<18x16xbf16> to vector<16x16xbf16>
      %33 = vector.extract_strided_slice %23 {offsets = [2, 0], sizes = [16, 16], strides = [1, 1]} : vector<18x16xbf16> to vector<16x16xbf16>
      %34 = vector.extract_strided_slice %27 {offsets = [0, 0], sizes = [16, 16], strides = [1, 1]} : vector<18x16xbf16> to vector<16x16xbf16>
      %35 = vector.extract_strided_slice %27 {offsets = [1, 0], sizes = [16, 16], strides = [1, 1]} : vector<18x16xbf16> to vector<16x16xbf16>
      %36 = vector.extract_strided_slice %27 {offsets = [2, 0], sizes = [16, 16], strides = [1, 1]} : vector<18x16xbf16> to vector<16x16xbf16>
      %37 = tpu.concatenate %28, %29, %30, %31, %32, %33, %34, %35, %36 in 1 : vector<16x16xbf16>, vector<16x16xbf16>, vector<16x16xbf16>, vector<16x16xbf16>, vector<16x16xbf16>, vector<16x16xbf16>, vector<16x16xbf16>, vector<16x16xbf16>, vector<16x16xbf16> -> vector<16x144xbf16>
      %cst_28 = arith.constant dense<0.000000e+00> : vector<16x32xf32>
      %38 = tpu.matmul %37, %2, %cst_28 {dimension_numbers = #tpu.dot_dimension_numbers<[1], [0], [0], [1], [0, 0, 1, 1], [], []>} : vector<16x144xbf16>, vector<144x32xbf16>, vector<16x32xf32> -> vector<16x32xf32>
      %39 = vector.broadcast %3 : vector<1x32xf32> to vector<16x32xf32>
      %40 = arith.addf %38, %39 : vector<16x32xf32>
      %41 = arith.truncf %40 : vector<16x32xf32> to vector<16x32xbf16>
      %c0_29 = arith.constant 0 : index
      %42 = arith.index_cast %15 : i32 to index
      %c0_30 = arith.constant 0 : index
      %c0_31 = arith.constant 0 : index
      %43 = vector.load %arg6[%c0_29, %42, %c0_30, %c0_31] : memref<1x16x16x32xbf16, #tpu.memory_space<vmem>>, vector<1x1x16x32xbf16>
      %44 = vector.shape_cast %43 : vector<1x1x16x32xbf16> to vector<16x32xbf16>
      %45 = vector.shape_cast %41 : vector<16x32xbf16> to vector<1x1x16x32xbf16>
      tpu.vector_store %arg6[%c0_29, %42, %c0_30, %c0_31], %45 {strides = array<i32>} : memref<1x16x16x32xbf16, #tpu.memory_space<vmem>>, vector<1x1x16x32xbf16>,
    }
    %c16_i32_17 = arith.constant 16 : i32
    return
  }
  func.func @transform_0(%arg0: i32) -> (i32, i32, i32, i32) {
    %c0_i32 = arith.constant 0 : i32
    %c0_i32_0 = arith.constant 0 : i32
    %c0_i32_1 = arith.constant 0 : i32
    %c0_i32_2 = arith.constant 0 : i32
    return %arg0, %c0_i32, %c0_i32_0, %c0_i32_1 : i32, i32, i32, i32
  }
  func.func @transform_1(%arg0: i32) -> (i32, i32) {
    %c0_i32 = arith.constant 0 : i32
    %c0_i32_0 = arith.constant 0 : i32
    %c0_i32_1 = arith.constant 0 : i32
    return %c0_i32, %c0_i32_0 : i32, i32
  }
  func.func @transform_2(%arg0: i32) -> (i32, i32) {
    %c0_i32 = arith.constant 0 : i32
    %c0_i32_0 = arith.constant 0 : i32
    %c0_i32_1 = arith.constant 0 : i32
    return %c0_i32, %c0_i32_0 : i32, i32
  }
  func.func @transform_3(%arg0: i32) -> (i32, i32) {
    %c0_i32 = arith.constant 0 : i32
    %c0_i32_0 = arith.constant 0 : i32
    %c0_i32_1 = arith.constant 0 : i32
    return %c0_i32, %c0_i32_0 : i32, i32
  }
  func.func @transform_4(%arg0: i32) -> (i32, i32) {
    %c0_i32 = arith.constant 0 : i32
    %c0_i32_0 = arith.constant 0 : i32
    %c0_i32_1 = arith.constant 0 : i32
    return %c0_i32, %c0_i32_0 : i32, i32
  }
  func.func @transform_5(%arg0: i32) -> (i32, i32, i32, i32) {
    %c0_i32 = arith.constant 0 : i32
    %c0_i32_0 = arith.constant 0 : i32
    %c0_i32_1 = arith.constant 0 : i32
    %c0_i32_2 = arith.constant 0 : i32
    return %arg0, %c0_i32, %c0_i32_0, %c0_i32_1 : i32, i32, i32, i32
  }
}

</mosaic_0001>

<llo_original>
// kernel: tpu_custom_call.1
$region0: #{tpu_custom_call.1}
  #allocation0 [shape = 'u32[]', space=smem, size = 0x4, offset = 0x4, fixed_abs, tag = 'smem constant byte address 0x4 - core index']
  #allocation1 [shape = 'u32[144,128]{1,0:T(1,128)}', space=vmem, size = 0x12000, scoped, tag = 'internal scratch']
  #allocation2 [shape = 'bf16[18,18,16]{2,1,0:T(8,128)(2,1)}', space=vmem, size = 0x1b000, scoped, tag = 'scratch operand']
  %s0 = inlined_call_operand.vmem [shape: bf16[4,18,18,3], index: 0, kind: input, shape index: {}]
  %s1 = inlined_call_operand.vmem [shape: bf16[27,16], index: 1, kind: input, shape index: {}]
  %s2 = inlined_call_operand.vmem [shape: f32[1,16], index: 2, kind: input, shape index: {}]
  %s3 = inlined_call_operand.vmem [shape: bf16[144,32], index: 3, kind: input, shape index: {}]
  %s4 = inlined_call_operand.vmem [shape: f32[1,32], index: 4, kind: input, shape index: {}]
  %s5 = inlined_call_operand.hbm [shape: bf16[4,16,16,32], index: 5, kind: output, shape index: {}]
  %s6 = sld [smem:[#allocation0]]
  $region67: #{tpu_custom_call.1} parent=0
    _
  %s8 = ssub.s32 1, %s6
  %s9 = scalar_select 0, %s8, %s6
  $region1: #{tpu_custom_call.1} parent=0
    #allocation3 [shape = 'u8[131072]{0}', space=vmem, size = 0x20000, scoped, tag = 'output window, operand 0']
    #allocation4 [shape = 's32[2]{0}', space=sflag, size = 0x8, scoped, tag = 'scoped memory for tpu_custom_call.1']
    %10 = vsyncpa [#allocation4], 0
    %s11 = scalar_lea.sflag [#allocation4], 1
    %12 = vsyncpa %s11, 0
    loop: start=0, step=1, limit=6
    $region2: #{tpu_custom_call.1} parent=1 // loop_pre_header
      _
    $region3: #{tpu_custom_call.1} parent=1 // loop_header
      %s14 = sphi 0, %s18
      %p15 = scmp.ge.s32.totalorder %s14, 6
      %s24 = sphi 0, %s26
      %s27 = sphi 0, %s24
      %s28 = sphi 0, %s27
      %s44 = sphi 0, %s28
      %s48 = sphi 0, %s48
      %s50 = sphi 0, %s48
      %s51 = sphi 0, %s50
      %s65 = sphi 0, %s51
      %s69 = sphi 0, %s69
      %s71 = sphi 0, %s69
      %s72 = sphi 0, %s71
      %s86 = sphi 0, %s72
      %s90 = sphi 0, %s90
      %s92 = sphi 0, %s90
      %s93 = sphi 0, %s92
      %s107 = sphi 0, %s93
      %s111 = sphi 0, %s111
      %s113 = sphi 0, %s111
      %s114 = sphi 0, %s113
      %s128 = sphi 0, %s114
      %s134 = sphi 0, %s136
      %s137 = sphi 0, %s134
      %s138 = sphi 0, %s137
      %s154 = sphi 0, %s138
    $region4: #{tpu_custom_call.1} parent=1 // loop_header_branch
      %17 = sbr.rel (%p15) target = $region8
    $region5: #{tpu_custom_call.1} parent=1 // loop_body
      %s19 = ssub.s32 %s14, 1
      %s20 = ssub.s32 %s14, 2
      %s21 = sadd.s32 %s14, 1
      %s22 = ssub.s32 %s14, %s21
      %p23 = scmp.eq.s32.totalorder %s22, 0
      %s25 = sadd.s32 %s24, 1
      %s26 = scalar_select %p23, %s24, %s25
      %p29 = pneg %p23
      %p30 = scmp.eq.s32.totalorder %s14, 3
      %p31 = por %p29, %p30
      %p32 = scmp.ne.s32.totalorder %s24, %s27
      %p33 = scmp.eq.s32.totalorder %s14, 0
      %p34 = por %p32, %p33
      %p35 = scmp.ne.s32.totalorder %s24, %s27
      %p36 = scmp.eq.s32.totalorder %s19, 3
      %p37 = por %p35, %p36
      %p38 = scmp.ne.s32.totalorder %s27, %s28
      %p39 = scmp.eq.s32.totalorder %s19, 0
      %p40 = por %p38, %p39
      %p41 = scmp.ne.s32.totalorder %s27, %s28
      %p42 = scmp.eq.s32.totalorder %s20, 3
      %p43 = por %p41, %p42
      %p45 = scmp.ne.s32.totalorder %s28, %s44
      %p46 = scmp.eq.s32.totalorder %s20, 0
      %p47 = por %p45, %p46
      %s49 = sadd.s32 %s48, 1
      %p52 = scmp.eq.s32.totalorder %s14, 3
      %p53 = scmp.ne.s32.totalorder %s48, %s50
      %p54 = scmp.eq.s32.totalorder %s14, 0
      %p55 = por %p53, %p54
      %p56 = scmp.ne.s32.totalorder %s48, %s50
      %p57 = scmp.eq.s32.totalorder %s19, 3
      %p58 = por %p56, %p57
      %p59 = scmp.ne.s32.totalorder %s50, %s51
      %p60 = scmp.eq.s32.totalorder %s19, 0
      %p61 = por %p59, %p60
      %p62 = scmp.ne.s32.totalorder %s50, %s51
      %p63 = scmp.eq.s32.totalorder %s20, 3
      %p64 = por %p62, %p63
      %p66 = scmp.ne.s32.totalorder %s51, %s65
      %p67 = scmp.eq.s32.totalorder %s20, 0
      %p68 = por %p66, %p67
      %s70 = sadd.s32 %s69, 1
      %p73 = scmp.eq.s32.totalorder %s14, 3
      %p74 = scmp.ne.s32.totalorder %s69, %s71
      %p75 = scmp.eq.s32.totalorder %s14, 0
      %p76 = por %p74, %p75
      %p77 = scmp.ne.s32.totalorder %s69, %s71
      %p78 = scmp.eq.s32.totalorder %s19, 3
      %p79 = por %p77, %p78
      %p80 = scmp.ne.s32.totalorder %s71, %s72
      %p81 = scmp.eq.s32.totalorder %s19, 0
      %p82 = por %p80, %p81
      %p83 = scmp.ne.s32.totalorder %s71, %s72
      %p84 = scmp.eq.s32.totalorder %s20, 3
      %p85 = por %p83, %p84
      %p87 = scmp.ne.s32.totalorder %s72, %s86
      %p88 = scmp.eq.s32.totalorder %s20, 0
      %p89 = por %p87, %p88
      %s91 = sadd.s32 %s90, 1
      %p94 = scmp.eq.s32.totalorder %s14, 3
      %p95 = scmp.ne.s32.totalorder %s90, %s92
      %p96 = scmp.eq.s32.totalorder %s14, 0
      %p97 = por %p95, %p96
      %p98 = scmp.ne.s32.totalorder %s90, %s92
      %p99 = scmp.eq.s32.totalorder %s19, 3
      %p100 = por %p98, %p99
      %p101 = scmp.ne.s32.totalorder %s92, %s93
      %p102 = scmp.eq.s32.totalorder %s19, 0
      %p103 = por %p101, %p102
      %p104 = scmp.ne.s32.totalorder %s92, %s93
      %p105 = scmp.eq.s32.totalorder %s20, 3
      %p106 = por %p104, %p105
      %p108 = scmp.ne.s32.totalorder %s93, %s107
      %p109 = scmp.eq.s32.totalorder %s20, 0
      %p110 = por %p108, %p109
      %s112 = sadd.s32 %s111, 1
      %p115 = scmp.eq.s32.totalorder %s14, 3
      %p116 = scmp.ne.s32.totalorder %s111, %s113
      %p117 = scmp.eq.s32.totalorder %s14, 0
      %p118 = por %p116, %p117
      %p119 = scmp.ne.s32.totalorder %s111, %s113
      %p120 = scmp.eq.s32.totalorder %s19, 3
      %p121 = por %p119, %p120
      %p122 = scmp.ne.s32.totalorder %s113, %s114
      %p123 = scmp.eq.s32.totalorder %s19, 0
      %p124 = por %p122, %p123
      %p125 = scmp.ne.s32.totalorder %s113, %s114
      %p126 = scmp.eq.s32.totalorder %s20, 3
      %p127 = por %p125, %p126
      %p129 = scmp.ne.s32.totalorder %s114, %s128
      %p130 = scmp.eq.s32.totalorder %s20, 0
      %p131 = por %p129, %p130
      %s132 = ssub.s32 %s14, %s21
      %p133 = scmp.eq.s32.totalorder %s132, 0
      %s135 = sadd.s32 %s134, 1
      %s136 = scalar_select %p133, %s134, %s135
      %p139 = pneg %p133
      %p140 = scmp.eq.s32.totalorder %s14, 3
      %p141 = por %p139, %p140
      %p142 = scmp.ne.s32.totalorder %s134, %s137
      %p143 = scmp.eq.s32.totalorder %s14, 0
      %p144 = por %p142, %p143
      %p145 = scmp.ne.s32.totalorder %s134, %s137
      %p146 = scmp.eq.s32.totalorder %s19, 3
      %p147 = por %p145, %p146
      %p148 = scmp.ne.s32.totalorder %s137, %s138
      %p149 = scmp.eq.s32.totalorder %s19, 0
      %p150 = por %p148, %p149
      %p151 = scmp.ne.s32.totalorder %s137, %s138
      %p152 = scmp.eq.s32.totalorder %s20, 3
      %p153 = por %p151, %p152
      %p155 = scmp.ne.s32.totalorder %s138, %s154
      %p156 = scmp.eq.s32.totalorder %s20, 0
      %p157 = por %p155, %p156
      %p158 = scmp.le.s32.totalorder 1, %s14
      %p159 = scmp.lt.s32.totalorder %s14, 5
      %p160 = pnand %p158, %p159
      %p161 = pneg %p160
      // Predicated region
      $region9: #{tpu_custom_call.1} parent=5 // pred_check
        _
      $region10: #{tpu_custom_call.1} parent=5 // pred_check_branch
        %163 = sbr.rel (%p160) target = $region12
      $region11: #{tpu_custom_call.1} parent=5 // pred_region
        %s164 = ssub.s32 %s14, 1
        // Predicated region
        $region13: #{tpu_custom_call.1} parent=11 // pred_check
          %p165 = pneg %p61
        $region14: #{tpu_custom_call.1} parent=11 // pred_check_branch
          %167 = sbr.rel (%p165) target = $region16
        $region15: #{tpu_custom_call.1} parent=11 // pred_region
          _
        $region16: #{tpu_custom_call.1} parent=11 // pred_fallthru
          _
        // Predicated region
        $region17: #{tpu_custom_call.1} parent=11 // pred_check
          %p168 = pneg %p82
        $region18: #{tpu_custom_call.1} parent=11 // pred_check_branch
          %170 = sbr.rel (%p168) target = $region20
        $region19: #{tpu_custom_call.1} parent=11 // pred_region
          _
        $region20: #{tpu_custom_call.1} parent=11 // pred_fallthru
          _
        // Predicated region
        $region21: #{tpu_custom_call.1} parent=11 // pred_check
          %p171 = pneg %p103
        $region22: #{tpu_custom_call.1} parent=11 // pred_check_branch
          %173 = sbr.rel (%p171) target = $region24
        $region23: #{tpu_custom_call.1} parent=11 // pred_region
          _
        $region24: #{tpu_custom_call.1} parent=11 // pred_fallthru
          _
        // Predicated region
        $region25: #{tpu_custom_call.1} parent=11 // pred_check
          %p174 = pneg %p124
        $region26: #{tpu_custom_call.1} parent=11 // pred_check_branch
          %176 = sbr.rel (%p174) target = $region28
        $region27: #{tpu_custom_call.1} parent=11 // pred_region
          _
        $region28: #{tpu_custom_call.1} parent=11 // pred_fallthru
          _
      $region12: #{tpu_custom_call.1} parent=5 // pred_fallthru
        _
      %p177 = scmp.lt.s32.totalorder %s14, 4
      // Predicated region
      $region29: #{tpu_custom_call.1} parent=5 // pred_check
        %p178 = pneg %p177
      $region30: #{tpu_custom_call.1} parent=5 // pred_check_branch
        %180 = sbr.rel (%p178) target = $region32
      $region31: #{tpu_custom_call.1} parent=5 // pred_region
        // Predicated region
        $region33: #{tpu_custom_call.1} parent=31 // pred_check
          %p181 = pneg %p34
        $region34: #{tpu_custom_call.1} parent=31 // pred_check_branch
          %183 = sbr.rel (%p181) target = $region36
        $region35: #{tpu_custom_call.1} parent=31 // pred_region
          %p184 = scmp.lt.s32.totalorder %s14, 3
          %s185 = scalar_select %p184, %s14, 3
          %s186 = smul.addr %s185, 54
          %s187 = smul.addr %s186, 4
          %s188 = scalar_lea.vmem %s0, %s187
        $region36: #{tpu_custom_call.1} parent=31 // pred_fallthru
          _
      $region32: #{tpu_custom_call.1} parent=5 // pred_fallthru
        _
      %p189 = scmp.le.s32.totalorder 1, %s14
      %p190 = scmp.lt.s32.totalorder %s14, 5
      %p191 = pnand %p189, %p190
      %p192 = pneg %p191
      // Predicated region
      $region37: #{tpu_custom_call.1} parent=5 // pred_check
        _
      $region38: #{tpu_custom_call.1} parent=5 // pred_check_branch
        %194 = sbr.rel (%p191) target = $region40
      $region39: #{tpu_custom_call.1} parent=5 // pred_region
        %s195 = ssub.s32 %s14, 1
        %p196 = scmp.lt.s32.totalorder %s19, 3
        %s197 = scalar_select %p196, %s19, 3
        %s198 = smul.addr %s197, 54
        %s199 = smul.addr %s198, 4
        %s200 = scalar_lea.vmem %s0, %s199
        %p201 = pneg %p40
        %p202 = pneg %p37
        %p203 = pneg %p61
        %p204 = pneg %p58
        %p205 = pneg %p82
        %p206 = pneg %p79
        %p207 = pneg %p103
        %p208 = pneg %p100
        %p209 = pneg %p124
        %p210 = pneg %p121
        %p211 = pneg %p150
        %p212 = pneg %p147
        %s213 = sand.u32 %s137, 1
        %s214 = scalar_lea.sflag [#allocation4], %s213
        %s215 = sand.u32 %s137, 1
        %s216 = smul.addr %s215, 128
        %s217 = scalar_lea.vmem [#allocation3], %s216
        %p218 = scmp.lt.s32.totalorder %s19, 3
        %s219 = scalar_select %p218, %s19, 3
        %s220 = smul.addr %s219, 54
        %s221 = smul.addr %s220, 4
        %s222 = scalar_lea.vmem %s0, %s221
        %v224 = vld [vmem:[%s1] sm:$0xf]
        %v225 = vld [vmem:[%s1 + $0x4] sm:$0xf]
        %v226 = vld [vmem:[%s1 + $0x8] sm:$0xf]
        %v227 = vld [vmem:[%s1 + $0xc] sm:$0x3]
        %v228 = vld [vmem:[%s2] sm:$0x1]
        %v229 = vld [vmem:[%s3] sm:$0xf]
        %v230 = vld [vmem:[%s3 + $0x4] sm:$0xf]
        %v231 = vld [vmem:[%s3 + $0x8] sm:$0xf]
        %v232 = vld [vmem:[%s3 + $0xc] sm:$0xf]
        %v233 = vld [vmem:[%s3 + $0x10] sm:$0xf]
        %v234 = vld [vmem:[%s3 + $0x14] sm:$0xf]
        %v235 = vld [vmem:[%s3 + $0x18] sm:$0xf]
        %v236 = vld [vmem:[%s3 + $0x1c] sm:$0xf]
        %v237 = vld [vmem:[%s3 + $0x20] sm:$0xf]
        %v238 = vld [vmem:[%s3 + $0x24] sm:$0xf]
        %v239 = vld [vmem:[%s3 + $0x28] sm:$0xf]
        %v240 = vld [vmem:[%s3 + $0x2c] sm:$0xf]
        %v241 = vld [vmem:[%s3 + $0x30] sm:$0xf]
        %v242 = vld [vmem:[%s3 + $0x34] sm:$0xf]
        %v243 = vld [vmem:[%s3 + $0x38] sm:$0xf]
        %v244 = vld [vmem:[%s3 + $0x3c] sm:$0xf]
        %v245 = vld [vmem:[%s3 + $0x40] sm:$0xf]
        %v246 = vld [vmem:[%s3 + $0x44] sm:$0xf]
        %v247 = vld [vmem:[%s4] sm:$0x1]
        %vm248 = vcmask 125952
        %249 = vst.msk [vmem:[#allocation2] sm:$0xf] %vm248, 0
        %250 = vst.msk [vmem:[#allocation2 + $0x4] sm:$0xf] %vm248, 0
        %vm251 = vcmask 122880
        %252 = vst.msk [vmem:[#allocation2 + $0x8] sm:$0x1] %vm251, 0
        %s253 = scalar_lea.vmem [#allocation2], 204
        %254 = vst.msk [vmem:[%s253] sm:$0xf] %vm248, 0
        %255 = vst.msk [vmem:[%s253 + $0x4] sm:$0xf] %vm248, 0
        %256 = vst.msk [vmem:[%s253 + $0x8] sm:$0x1] %vm251, 0
        loop: start=0, step=1, limit=16
        $region41: #{tpu_custom_call.1} parent=39 // loop_pre_header
          _
        $region42: #{tpu_custom_call.1} parent=39 // loop_header
          %s258 = sphi 0, %s262
          %p259 = scmp.ge.s32.totalorder %s258, 16
        $region43: #{tpu_custom_call.1} parent=39 // loop_header_branch
          %261 = sbr.rel (%p259) target = $region47
        $region44: #{tpu_custom_call.1} parent=39 // loop_body
          %s263 = smul.u32 %s258, 3
          %s264 = smul.addr %s263, 4
          %s265 = scalar_lea.vmem %s222, %s264
          %v266 = vld [vmem:[%s265] sm:$0xf]
          %v267 = vld [vmem:[%s265 + $0x4] sm:$0xf]
          %v268 = vld [vmem:[%s265 + $0x8] sm:$0x1]
          %s269 = sadd.s32 %s258, 1
          %s270 = smul.u32 %s269, 3
          %s271 = smul.addr %s270, 4
          %s272 = scalar_lea.vmem %s222, %s271
          %v273 = vld [vmem:[%s272] sm:$0xf]
          %v274 = vld [vmem:[%s272 + $0x4] sm:$0xf]
          %v275 = vld [vmem:[%s272 + $0x8] sm:$0x1]
          %s276 = sadd.s32 %s258, 2
          %s277 = smul.u32 %s276, 3
          %s278 = smul.addr %s277, 4
          %s279 = scalar_lea.vmem %s222, %s278
          %v280 = vld [vmem:[%s279] sm:$0xf]
          %v281 = vld [vmem:[%s279 + $0x4] sm:$0xf]
          %v282 = vld [vmem:[%s279 + $0x8] sm:$0x1]
          %v285 = vunpack.c.l.b16 %v266
          %v286 = vunpack.c.l.b16 %v267
          %v287 = vpack.c.b16 %v286, %v285
          %v289 = vunpack.c.l.b16 %v268
          %v290 = vpack.c.b16 %v289, %v289
          %vm291 = vsmask.f32 7424
          %v293 = vshrl.u32 %v287, 16
          %v295 = vshll.u32 %v287, 16
          %v297 = vrot.slane %v295, 1
          %v298 = vor.u32 %v293, %v297
          %v300 = vshll.u32 %v290, 16
          %v302 = vrot.slane %v300, 1
          %v303 = vsel %vm291, %v298, %v302
          %304 = vrot.lane.b32.xlu0 %v303, 3
          %v305 = vpop.permute.xlu0 %304
          %vm306 = vcmask 1046528
          %v307 = vrot.slane %v287, 1
          %v308 = vrot.slane %v290, 1
          %v309 = vsel %vm306, %v307, %v308
          %310 = vrot.lane.b32.xlu0 %v309, 6
          %v311 = vpop.permute.xlu0 %310
          %v314 = vunpack.c.l.b16 %v273
          %v315 = vunpack.c.l.b16 %v274
          %v316 = vpack.c.b16 %v315, %v314
          %317 = vrot.lane.b32.xlu0 %v316, 9
          %v318 = vpop.permute.xlu0 %317
          %v320 = vunpack.c.l.b16 %v275
          %v321 = vpack.c.b16 %v320, %v320
          %v323 = vshrl.u32 %v316, 16
          %v325 = vshll.u32 %v316, 16
          %v327 = vrot.slane %v325, 1
          %v328 = vor.u32 %v323, %v327
          %v330 = vshll.u32 %v321, 16
          %v332 = vrot.slane %v330, 1
          %v333 = vsel %vm291, %v328, %v332
          %334 = vrot.lane.b32.xlu0 %v333, 12
          %v335 = vpop.permute.xlu0 %334
          %v336 = vrot.slane %v316, 1
          %v337 = vrot.slane %v321, 1
          %v338 = vsel %vm306, %v336, %v337
          %339 = vrot.lane.b32.xlu0 %v338, 15
          %v340 = vpop.permute.xlu0 %339
          %v343 = vunpack.c.l.b16 %v280
          %v344 = vunpack.c.l.b16 %v281
          %v345 = vpack.c.b16 %v344, %v343
          %346 = vrot.lane.b32.xlu0 %v345, 18
          %v347 = vpop.permute.xlu0 %346
          %v349 = vunpack.c.l.b16 %v282
          %v350 = vpack.c.b16 %v349, %v349
          %v352 = vshrl.u32 %v345, 16
          %v354 = vshll.u32 %v345, 16
          %v356 = vrot.slane %v354, 1
          %v357 = vor.u32 %v352, %v356
          %v359 = vshll.u32 %v350, 16
          %v361 = vrot.slane %v359, 1
          %v362 = vsel %vm291, %v357, %v361
          %363 = vrot.lane.b32.xlu0 %v362, 21
          %v364 = vpop.permute.xlu0 %363
          %v365 = vrot.slane %v345, 1
          %v366 = vrot.slane %v350, 1
          %v367 = vsel %vm306, %v365, %v366
          %368 = vrot.lane.b32.xlu0 %v367, 24
          %v369 = vpop.permute.xlu0 %368
          %vm370 = vcmask 23552
          %v372 = vsel %vm370, %v287, %v305
          %vm373 = vcmask 48128
          %v375 = vsel %vm373, %v372, %v311
          %vm376 = vcmask 72704
          %v378 = vsel %vm376, %v375, %v318
          %vm379 = vcmask 97280
          %v381 = vsel %vm379, %v378, %v335
          %vm382 = vcmask 121856
          %v384 = vsel %vm382, %v381, %v340
          %vm385 = vcmask 146432
          %v387 = vsel %vm385, %v384, %v347
          %vm388 = vcmask 171008
          %v390 = vsel %vm388, %v387, %v364
          %vm391 = vcmask 195584
          %v393 = vsel %vm391, %v390, %v369
          %v395 = vlaneseq
          %v396 = vshrl.u32 %v395, 7
          %v397 = vsub.s32 0, %v396
          %v398 = vrot.slane %v228, %v397
          %v404 = vunpack.c.l.b16 %v224
          %v405 = vunpack.c.l.b16 %v225
          %v406 = vunpack.c.l.b16 %v226
          %v407 = vunpack.c.l.b16 %v227
          %v408 = vpack.c.b16 %v405, %v404
          %v409 = vpack.c.b16 %v407, %v406
          %vm411 = vcmask 220160
          %v412 = vsel %vm411, %v393, 0
          %vm414 = vcmask 1044480
          %vm415 = vcmask 1045504
          %v416 = vsel %vm414, 4294967295, 65535
          %v417 = vsel %vm415, %v416, 0
          %v419 = vand.u32 %v409, %v417
          %421 = vmatprep.subr.bf16.mxu0 0
          %422 = vmatpush1.bf16.msra.mxu0 0
          %423 = vmatprep.subr.bf16.mxu0 0
          %424 = vmatpush1.bf16.msra.mxu0 0
          %425 = vmatprep.subr.bf16.mxu0 0
          %426 = vmatpush1.bf16.msra.mxu0 0
          %427 = vmatprep.subr.bf16.mxu0 0
          %428 = vmatpush1.bf16.msra.mxu0 0
          %429 = vmatprep.subr.bf16.mxu0 0
          %430 = vmatpush1.bf16.msra.mxu0 0
          %431 = vmatprep.subr.bf16.mxu0 0
          %432 = vmatpush1.bf16.msra.mxu0 0
          %433 = vmatprep.subr.bf16.mxu0 0
          %434 = vmatpush1.bf16.msra.mxu0 %v419
          %435 = vmatprep.subr.bf16.mxu0 0
          %436 = vmatpush1.bf16.msra.mxu0 %v408
          %437 = vmatprep.subr.bf16.mxu0 0
          %438 = vmatpush2.bf16.msra.mxu0 0
          %439 = vmatprep.subr.bf16.mxu0 0
          %440 = vmatpush2.bf16.msra.mxu0 0
          %441 = vmatprep.subr.bf16.mxu0 0
          %442 = vmatpush2.bf16.msra.mxu0 0
          %443 = vmatprep.subr.bf16.mxu0 0
          %444 = vmatpush2.bf16.msra.mxu0 0
          %445 = vmatprep.subr.bf16.mxu0 0
          %446 = vmatpush2.bf16.msra.mxu0 0
          %447 = vmatprep.subr.bf16.mxu0 0
          %448 = vmatpush2.bf16.msra.mxu0 0
          %449 = vmatprep.subr.bf16.mxu0 0
          %450 = vmatpush2.bf16.msra.mxu0 0
          %451 = vmatprep.subr.bf16.mxu0 0
          %452 = vmatpush2.bf16.msra.mxu0 0
          %453 = vmatprep.mubr.bf16.mxu0 0
          %454 = vmatmul.mubr.bf16.gmra.mxu0 %v412
          %v455 = vpop.f32.mrf.mxu0
          %v456 = vadd.f32 %v398, %v455
          %v457 = vpop.f32.mrf.mxu0
          %v458 = vpop.f32.mrf.mxu0
          %v459 = vadd.f32 %v398, %v458
          %v460 = vpop.f32.mrf.mxu0
          %461 = vdwg.mxu0
          %v462 = vmax.f32 %v456, 0.0
          %v463 = vmax.f32 %v459, 0.0
          %v464 = vpack.c.bf16 %v463, %v462
          %v466 = vshrl.u32 %v464, 16
          %v468 = vrot.slane %v466, 7
          %v469 = vshll.u32 %v464, 16
          %v471 = vor.u32 %v468, %v469
          %vm474 = vcmask 1040384
          %vm475 = vsmask.f32 256
          %vm476 = vmand %vm474, %vm475
          %v477 = vsel %vm476, 0, %v471
          %v478 = vsel %vm476, %v468, 0
          %v481 = vunpack.c.l.b16 %v477
          %v482 = vunpack.c.h.b16 %v477
          %v483 = vunpack.c.l.b16 %v478
          %v484 = vpack.c.b16 %v481, %v481
          %v485 = vpack.c.b16 %v482, %v482
          %v486 = vpack.c.b16 %v483, %v483
          %s490 = smul.addr %s270, 4
          %s491 = scalar_lea.vmem [#allocation2], %s490
          %492 = vst.msk [vmem:[%s491] sm:$0xf] %vm248, %v484
          %493 = vst.msk [vmem:[%s491 + $0x4] sm:$0xf] %vm248, %v485
          %494 = vst.msk [vmem:[%s491 + $0x8] sm:$0x1] %vm251, %v486
        $region45: #{tpu_custom_call.1} parent=39 // loop_footer
          %s262 = sadd.s32 1, %s258
        $region46: #{tpu_custom_call.1} parent=39 // loop_footer_branch
          %257 = sbr.rel target = $region42
        $region47: #{tpu_custom_call.1} parent=39 // loop_exit
          _
        loop: start=0, step=1, limit=16
        $region48: #{tpu_custom_call.1} parent=39 // loop_pre_header
          _
        $region49: #{tpu_custom_call.1} parent=39 // loop_header
          %s496 = sphi 0, %s500
          %p497 = scmp.ge.s32.totalorder %s496, 16
        $region50: #{tpu_custom_call.1} parent=39 // loop_header_branch
          %499 = sbr.rel (%p497) target = $region54
        $region51: #{tpu_custom_call.1} parent=39 // loop_body
          %s501 = smul.u32 %s496, 3
          %s502 = smul.addr %s501, 4
          %s503 = scalar_lea.vmem [#allocation2], %s502
          %v504 = vld [vmem:[%s503] sm:$0xf]
          %v505 = vld [vmem:[%s503 + $0x4] sm:$0xf]
          %v506 = vld [vmem:[%s503 + $0x8] sm:$0x1]
          %s507 = sadd.s32 %s496, 1
          %s508 = smul.u32 %s507, 3
          %s509 = smul.addr %s508, 4
          %s510 = scalar_lea.vmem [#allocation2], %s509
          %v511 = vld [vmem:[%s510] sm:$0xf]
          %v512 = vld [vmem:[%s510 + $0x4] sm:$0xf]
          %v513 = vld [vmem:[%s510 + $0x8] sm:$0x1]
          %s514 = sadd.s32 %s496, 2
          %s515 = smul.u32 %s514, 3
          %s516 = smul.addr %s515, 4
          %s517 = scalar_lea.vmem [#allocation2], %s516
          %v518 = vld [vmem:[%s517] sm:$0xf]
          %v519 = vld [vmem:[%s517 + $0x4] sm:$0xf]
          %v520 = vld [vmem:[%s517 + $0x8] sm:$0x1]
          %v523 = vunpack.c.l.b16 %v504
          %v524 = vunpack.c.l.b16 %v505
          %v525 = vpack.c.b16 %v524, %v523
          %v527 = vunpack.c.l.b16 %v506
          %v528 = vpack.c.b16 %v527, %v527
          %vm529 = vsmask.f32 7424
          %v531 = vshrl.u32 %v525, 16
          %v533 = vshll.u32 %v525, 16
          %v535 = vrot.slane %v533, 1
          %v536 = vor.u32 %v531, %v535
          %v538 = vshll.u32 %v528, 16
          %v540 = vrot.slane %v538, 1
          %v541 = vsel %vm529, %v536, %v540
          %542 = vrot.lane.b32.xlu0 %v541, 16
          %v543 = vpop.permute.xlu0 %542
          %vm544 = vcmask 1046528
          %v545 = vrot.slane %v525, 1
          %v546 = vrot.slane %v528, 1
          %v547 = vsel %vm544, %v545, %v546
          %548 = vrot.lane.b32.xlu0 %v547, 32
          %v549 = vpop.permute.xlu0 %548
          %v552 = vunpack.c.l.b16 %v511
          %v553 = vunpack.c.l.b16 %v512
          %v554 = vpack.c.b16 %v553, %v552
          %555 = vrot.lane.b32.xlu0 %v554, 48
          %v556 = vpop.permute.xlu0 %555
          %v558 = vunpack.c.l.b16 %v513
          %v559 = vpack.c.b16 %v558, %v558
          %v561 = vshrl.u32 %v554, 16
          %v563 = vshll.u32 %v554, 16
          %v565 = vrot.slane %v563, 1
          %v566 = vor.u32 %v561, %v565
          %v568 = vshll.u32 %v559, 16
          %v570 = vrot.slane %v568, 1
          %v571 = vsel %vm529, %v566, %v570
          %572 = vrot.lane.b32.xlu0 %v571, 64
          %v573 = vpop.permute.xlu0 %572
          %v574 = vrot.slane %v554, 1
          %v575 = vrot.slane %v559, 1
          %v576 = vsel %vm544, %v574, %v575
          %577 = vrot.lane.b32.xlu0 %v576, 80
          %v578 = vpop.permute.xlu0 %577
          %v581 = vunpack.c.l.b16 %v518
          %v582 = vunpack.c.l.b16 %v519
          %v583 = vpack.c.b16 %v582, %v581
          %584 = vrot.lane.b32.xlu0 %v583, 96
          %v585 = vpop.permute.xlu0 %584
          %v587 = vunpack.c.l.b16 %v520
          %v588 = vpack.c.b16 %v587, %v587
          %v590 = vshrl.u32 %v583, 16
          %v592 = vshll.u32 %v583, 16
          %v594 = vrot.slane %v592, 1
          %v595 = vor.u32 %v590, %v594
          %v597 = vshll.u32 %v588, 16
          %v599 = vrot.slane %v597, 1
          %v600 = vsel %vm529, %v595, %v599
          %601 = vrot.lane.b32.xlu0 %v600, 112
          %v602 = vpop.permute.xlu0 %601
          %v603 = vrot.slane %v583, 1
          %v604 = vrot.slane %v588, 1
          %v605 = vsel %vm544, %v603, %v604
          %vm606 = vcmask 130048
          %v608 = vsel %vm606, %v525, %v543
          %vm609 = vcmask 261120
          %v611 = vsel %vm609, %v608, %v549
          %vm612 = vcmask 392192
          %v614 = vsel %vm612, %v611, %v556
          %vm615 = vcmask 523264
          %v617 = vsel %vm615, %v614, %v573
          %vm618 = vcmask 654336
          %v620 = vsel %vm618, %v617, %v578
          %vm621 = vcmask 785408
          %v623 = vsel %vm621, %v620, %v585
          %vm624 = vcmask 916480
          %v626 = vsel %vm624, %v623, %v602
          %v629 = vlaneseq
          %v630 = vshrl.u32 %v629, 7
          %v631 = vsub.s32 0, %v630
          %v632 = vrot.slane %v247, %v631
          %v652 = vunpack.c.l.b16 %v229
          %v653 = vunpack.c.l.b16 %v230
          %v654 = vunpack.c.l.b16 %v231
          %v655 = vunpack.c.l.b16 %v232
          %v656 = vunpack.c.l.b16 %v233
          %v657 = vunpack.c.l.b16 %v234
          %v658 = vunpack.c.l.b16 %v235
          %v659 = vunpack.c.l.b16 %v236
          %v660 = vunpack.c.l.b16 %v237
          %v661 = vunpack.c.l.b16 %v238
          %v662 = vunpack.c.l.b16 %v239
          %v663 = vunpack.c.l.b16 %v240
          %v664 = vunpack.c.l.b16 %v241
          %v665 = vunpack.c.l.b16 %v242
          %v666 = vunpack.c.l.b16 %v243
          %v667 = vunpack.c.l.b16 %v244
          %v668 = vunpack.c.l.b16 %v245
          %v669 = vunpack.c.l.b16 %v246
          %v670 = vpack.c.b16 %v653, %v652
          %v671 = vpack.c.b16 %v655, %v654
          %v672 = vpack.c.b16 %v657, %v656
          %v673 = vpack.c.b16 %v659, %v658
          %v674 = vpack.c.b16 %v661, %v660
          %v675 = vpack.c.b16 %v663, %v662
          %v676 = vpack.c.b16 %v665, %v664
          %v677 = vpack.c.b16 %v667, %v666
          %v678 = vpack.c.b16 %v669, %v668
          %v689 = vsel %vm606, %v605, 0
          %691 = vmatprep.subr.bf16.mxu0 0
          %692 = vmatpush1.bf16.msra.mxu0 %v677
          %693 = vmatprep.subr.bf16.mxu0 0
          %694 = vmatpush1.bf16.msra.mxu0 %v676
          %695 = vmatprep.subr.bf16.mxu0 0
          %696 = vmatpush1.bf16.msra.mxu0 %v675
          %697 = vmatprep.subr.bf16.mxu0 0
          %698 = vmatpush1.bf16.msra.mxu0 %v674
          %699 = vmatprep.subr.bf16.mxu0 0
          %700 = vmatpush1.bf16.msra.mxu0 %v673
          %701 = vmatprep.subr.bf16.mxu0 0
          %702 = vmatpush1.bf16.msra.mxu0 %v672
          %703 = vmatprep.subr.bf16.mxu0 0
          %704 = vmatpush1.bf16.msra.mxu0 %v671
          %705 = vmatprep.subr.bf16.mxu0 0
          %706 = vmatpush1.bf16.msra.mxu0 %v670
          %707 = vmatprep.subr.bf16.mxu0 0
          %708 = vmatpush2.bf16.msra.mxu0 0
          %709 = vmatprep.subr.bf16.mxu0 0
          %710 = vmatpush2.bf16.msra.mxu0 0
          %711 = vmatprep.subr.bf16.mxu0 0
          %712 = vmatpush2.bf16.msra.mxu0 0
          %713 = vmatprep.subr.bf16.mxu0 0
          %714 = vmatpush2.bf16.msra.mxu0 0
          %715 = vmatprep.subr.bf16.mxu0 0
          %716 = vmatpush2.bf16.msra.mxu0 0
          %717 = vmatprep.subr.bf16.mxu0 0
          %718 = vmatpush2.bf16.msra.mxu0 0
          %719 = vmatprep.subr.bf16.mxu0 0
          %720 = vmatpush2.bf16.msra.mxu0 0
          %721 = vmatprep.subr.bf16.mxu0 0
          %722 = vmatpush2.bf16.msra.mxu0 %v678
          %723 = vmatprep.mubr.bf16.mxu0 %v689
          %724 = vmatmul.mubr.bf16.gmra.mxu0 %v626
          %v725 = vpop.f32.mrf.mxu0
          %v726 = vadd.f32 %v632, %v725
          %v727 = vpop.f32.mrf.mxu0
          %v728 = vpop.f32.mrf.mxu0
          %v729 = vadd.f32 %v632, %v728
          %v730 = vpop.f32.mrf.mxu0
          %731 = vdwg.mxu0
          %v732 = vpack.c.bf16 %v729, %v726
          %v734 = vunpack.c.l.b16 %v732
          %v735 = vunpack.c.h.b16 %v732
          %v736 = vpack.c.b16 %v734, %v734
          %v737 = vpack.c.b16 %v735, %v735
          %s740 = smul.u32 %s496, 2
          %s741 = smul.addr %s740, 4
          %s742 = scalar_lea.vmem %s217, %s741 [#allocation3]
          %vm743 = vcmask 257024
          %744 = vst.msk [vmem:[%s742] sm:$0xf] %vm743, %v736
          %745 = vst.msk [vmem:[%s742 + $0x4] sm:$0xf] %vm743, %v737
        $region52: #{tpu_custom_call.1} parent=39 // loop_footer
          %s500 = sadd.s32 1, %s496
        $region53: #{tpu_custom_call.1} parent=39 // loop_footer_branch
          %495 = sbr.rel target = $region49
        $region54: #{tpu_custom_call.1} parent=39 // loop_exit
          _
        %s746 = sand.u32 %s137, 1
        %s747 = scalar_lea.sflag [#allocation4], %s746
        %s748 = sand.u32 %s137, 1
        %s749 = smul.addr %s748, 128
        %s750 = scalar_lea.vmem [#allocation3], %s749
        // Predicated region
        $region55: #{tpu_custom_call.1} parent=39 // pred_check
          %p751 = pneg %p147
        $region56: #{tpu_custom_call.1} parent=39 // pred_check_branch
          %753 = sbr.rel (%p751) target = $region58
        $region57: #{tpu_custom_call.1} parent=39 // pred_region
          %s755 = ssub.s32 2048, 2048
          %756 = vsyncadd %s747, %s755
          %s757 = smul.addr %s19, 32
          %s758 = smul.addr %s757, 64
          %s759 = scalar_lea.hbm %s5, %s758
          %s760 = sshll.u32 %s750, 4
          %s761 = int_to_ptr.vmem [resolvable:$true] %s760
          %766 = dma.vmem_to_hbm [thread:$0]  %s761, 2048, %s759, %s747, 64, 64, 4
        $region58: #{tpu_custom_call.1} parent=39 // pred_fallthru
          _
      $region40: #{tpu_custom_call.1} parent=5 // pred_fallthru
        _
      %p767 = scmp.le.s32.totalorder 2, %s14
      // Predicated region
      $region59: #{tpu_custom_call.1} parent=5 // pred_check
        %p768 = pneg %p767
      $region60: #{tpu_custom_call.1} parent=5 // pred_check_branch
        %770 = sbr.rel (%p768) target = $region62
      $region61: #{tpu_custom_call.1} parent=5 // pred_region
        %s771 = ssub.s32 %s14, 2
        // Predicated region
        $region63: #{tpu_custom_call.1} parent=61 // pred_check
          %p772 = pneg %p153
        $region64: #{tpu_custom_call.1} parent=61 // pred_check_branch
          %774 = sbr.rel (%p772) target = $region66
        $region65: #{tpu_custom_call.1} parent=61 // pred_region
          %s775 = sand.u32 %s138, 1
          %s776 = scalar_lea.sflag [#allocation4], %s775
          %s777 = sand.u32 %s138, 1
          %s778 = smul.addr %s777, 128
          %s779 = scalar_lea.vmem [#allocation3], %s778
          %780 = dma.done %s776, 2048
        $region66: #{tpu_custom_call.1} parent=61 // pred_fallthru
          _
      $region62: #{tpu_custom_call.1} parent=5 // pred_fallthru
        _
    $region6: #{tpu_custom_call.1} parent=1 // loop_footer
      %s18 = sadd.s32 1, %s14
    $region7: #{tpu_custom_call.1} parent=1 // loop_footer_branch
      %13 = sbr.rel target = $region3
    $region8: #{tpu_custom_call.1} parent=1 // loop_exit
      _
    %781 = vsyncpa [#allocation4], 1
    %s782 = scalar_lea.sflag [#allocation4], 1
    %783 = vsyncpa %s782, 1

</llo_original>
